<compile_context>
chip_gen: v7x
topology: tpu7x:2x2x1
jax: 0.10.0
libtpu: 0.0.40
codegen_flags: <defaults>
</compile_context>

<pallas_src>
import functools

import jax
import jax.numpy as jnp
from jax.experimental import pallas as pl
from jax.experimental.pallas import tpu as pltpu

_LANE = 128
_MIB = 1024 * 1024


def _round_up(x, m):
    return ((x + m - 1) // m) * m


def _cdiv(a, b):
    return (a + b - 1) // b


def _sublane_multiple(dtype):
    itemsize = jnp.dtype(dtype).itemsize
    return {4: 8, 2: 16, 1: 32}.get(itemsize, 8)


def _device_vmem_bytes():
    try:
        return int(pltpu.get_tpu_info().vmem_capacity_bytes)
    except Exception:
        return 64 * _MIB  # conservative fallback: v7x per-TensorCore VMEM


def _is_v5e():
    try:
        kind = jax.devices()[0].device_kind.lower()
        return ("v5 lite" in kind) or ("v5e" in kind) or ("v5lite" in kind)
    except Exception:
        return False


def _sop_head_kernel(x_ref, w_ref, b_ref, o_ref, *, cast_x_to_bf16):
    # x_ref: [TB, H]   w_ref: [H, 128]   b_ref: [1, 128] (f32)   o_ref: [TB, 128]
    x = x_ref[...]
    if cast_x_to_bf16:
        x = x.astype(jnp.bfloat16)  # single-pass MXU on v5e; f32 accumulation
    acc = jnp.dot(x, w_ref[...], preferred_element_type=jnp.float32)
    o_ref[...] = (acc + b_ref[...]).astype(o_ref.dtype)


@functools.partial(jax.jit, static_argnames=("tile_b",))
def albert_sop_head(hidden_states, dense_weight, dense_bias, extra_bias, *, tile_b=None):
    """AlbertSequenceOrderHead forward.

    hidden_states: [B, H]
    dense_weight:  [2, H]   (PyTorch nn.Linear weight layout)
    dense_bias:    [2]
    extra_bias:    [2]      (the module's self.bias; zeros at init)
    returns:       [B, 2]
    """
    B, H = hidden_states.shape
    N, Hw = dense_weight.shape
    assert Hw == H
    N_pad = _LANE

    x_dtype = hidden_states.dtype
    itemsize = jnp.dtype(x_dtype).itemsize
    sub = _sublane_multiple(x_dtype)

    # v5e has no single-pass f32 MXU path; run the matmul in bf16 there.
    cast_x_to_bf16 = bool(x_dtype == jnp.float32 and _is_v5e())
    w_dtype = jnp.bfloat16 if cast_x_to_bf16 else dense_weight.dtype
    w_itemsize = jnp.dtype(w_dtype).itemsize
    w_vmem_bytes = 2 * H * N_pad * w_itemsize  # grid-invariant, but double-buffered

    # ---- generation-aware tile_b selection (HBM-streaming roofline) --------
    dev_vmem = _device_vmem_bytes()
    usable_vmem = dev_vmem - 8 * _MIB
    if dev_vmem >= 96 * _MIB:            # v5e / v6e: 128 MiB VMEM
        gen_x_budget, row_cap = 48 * _MIB, 4096
    else:                                # v7x: 64 MiB per TensorCore
        gen_x_budget, row_cap = 32 * _MIB, 2048

    B_ceil = _round_up(B, sub)

    if tile_b is None:
        x_budget = min(gen_x_budget,
                       max(2 * sub * H * itemsize,
                           usable_vmem - w_vmem_bytes - 8 * _MIB))
        tile_b = x_budget // max(1, 2 * H * itemsize)
        tile_b = max(sub, min(row_cap, (tile_b // sub) * sub))
        tile_b = min(tile_b, B_ceil)
        # Target >=4 (ideally 8) total grid steps when the batch is large
        # enough, so each v7x TensorCore gets >=2 pipelined steps.
        min_split_rows = max(sub, 64)
        if B_ceil >= 8 * min_split_rows:
            target_steps = 8
        elif B_ceil >= 4 * min_split_rows:
            target_steps = 4
        else:
            target_steps = 1
        if target_steps > 1:
            tile_b = min(tile_b,
                         max(min_split_rows,
                             _round_up(_cdiv(B_ceil, target_steps), sub)))
    else:
        tile_b = max(sub, _round_up(tile_b, sub))
        tile_b = min(tile_b, B_ceil)

    # Ragged last block: no host-side padding of x.
    grid = (_cdiv(B, tile_b),)

    # ---- weight / bias prep (pre-transposed, lane-padded to 128) -----------
    w_pad = jnp.zeros((H, N_pad), dtype=w_dtype)
    w_pad = w_pad.at[:, :N].set(dense_weight.T.astype(w_dtype))

    b_pad = jnp.zeros((1, N_pad), dtype=jnp.float32)
    b_pad = b_pad.at[0, :N].set((dense_bias + extra_bias).astype(jnp.float32))

    # ---- VMEM budget (double-buffered x tiles dominate); device-clamped ----
    vmem_bytes = (
        2 * tile_b * H * itemsize          # x (2 bufs)
        + 2 * tile_b * N_pad * itemsize    # out (2 bufs)
        + w_vmem_bytes                     # weight (2 bufs, grid-invariant)
        + 2 * N_pad * 4                    # bias (2 bufs)
    )
    vmem_limit = min(max(int(1.25 * vmem_bytes), 32 * _MIB), usable_vmem)

    kernel = functools.partial(_sop_head_kernel, cast_x_to_bf16=cast_x_to_bf16)

    out_padded = pl.pallas_call(
        kernel,
        out_shape=jax.ShapeDtypeStruct((B, N_pad), x_dtype),
        grid_spec=pltpu.PrefetchScalarGridSpec(
            num_scalar_prefetch=0,
            grid=grid,
            in_specs=[
                pl.BlockSpec((tile_b, H), lambda i: (i, 0)),
                pl.BlockSpec((H, N_pad), lambda i: (0, 0)),
                pl.BlockSpec((1, N_pad), lambda i: (0, 0)),
            ],
            out_specs=pl.BlockSpec((tile_b, N_pad), lambda i: (i, 0)),
        ),
        compiler_params=pltpu.CompilerParams(
            dimension_semantics=("parallel",),
            vmem_limit_bytes=int(vmem_limit),
        ),
    )(hidden_states, w_pad, b_pad)

    # Lane slice only (batch was never padded); fuses under jit.
    return out_padded[:, :N]


if __name__ == "__main__":
    # Small synthetic config: hidden_size=32, batch=8.
    hidden_size = 32
    batch = 8

    key = jax.random.PRNGKey(0)
    k_x, k_w, k_b1 = jax.random.split(key, 3)

    # PyTorch shapes: dense.weight [2, H], dense.bias [2], extra bias [2]
    # (the extra bias is zero-initialized in the module).
    dense_weight = jax.random.normal(k_w, (2, hidden_size), jnp.float32) * 0.02
    dense_bias = jax.random.normal(k_b1, (2,), jnp.float32) * 0.02
    extra_bias = jnp.zeros((2,), jnp.float32)

    hidden_states = jax.random.normal(k_x, (batch, hidden_size), jnp.float32)

    out = albert_sop_head(hidden_states, dense_weight, dense_bias, extra_bias)
    out = jax.block_until_ready(out)

    # Reference check in plain JAX.
    ref = hidden_states @ dense_weight.T + dense_bias + extra_bias
    assert out.shape == (batch, 2)

    # v5e runs the MXU pass in bf16 (no single-pass f32 path); loosen there.
    if _is_v5e():
        atol, rtol = 2e-2, 2e-2
    else:
        atol, rtol = 1e-5, 1e-5
    assert jnp.allclose(out, ref, atol=atol, rtol=rtol)

    print("KERNEL_OK")
</pallas_src>

<mosaic_0001>
module attributes {stable_mosaic.version = 11 : i64} {
  func.func @_sop_head_kernel(%arg0: i32, %arg1: memref<8x32xf32, #tpu.memory_space<vmem>>, %arg2: memref<32x128xf32, #tpu.memory_space<vmem>>, %arg3: memref<1x128xf32, #tpu.memory_space<vmem>>, %arg4: memref<8x128xf32, #tpu.memory_space<vmem>>) attributes {dimension_semantics = [#tpu.dimension_semantics<parallel>], iteration_bounds = array<i64: 1>, scalar_prefetch = 0 : i64, scratch_operands = 0 : i64, tpu.core_type = #tpu.core_type<tc>, window_params = [{transform_indices = @transform_0, window_bounds = array<i64: 8, 32>}, {pipeline_mode = #tpu.pipeline_mode<synchronous>, transform_indices = @transform_1, window_bounds = array<i64: 32, 128>}, {pipeline_mode = #tpu.pipeline_mode<synchronous>, transform_indices = @transform_2, window_bounds = array<i64: 1, 128>}, {transform_indices = @transform_3, window_bounds = array<i64: 8, 128>}]} {
    %c0 = arith.constant 0 : index
    %c0_0 = arith.constant 0 : index
    %0 = vector.load %arg1[%c0, %c0_0] : memref<8x32xf32, #tpu.memory_space<vmem>>, vector<8x32xf32>
    %c0_1 = arith.constant 0 : index
    %c0_2 = arith.constant 0 : index
    %1 = vector.load %arg2[%c0_1, %c0_2] : memref<32x128xf32, #tpu.memory_space<vmem>>, vector<32x128xf32>
    %cst = arith.constant dense<0.000000e+00> : vector<8x128xf32>
    %2 = tpu.matmul %0, %1, %cst {dimension_numbers = #tpu.dot_dimension_numbers<[1], [0], [0], [1], [0, 0, 1, 1], [], []>} : vector<8x32xf32>, vector<32x128xf32>, vector<8x128xf32> -> vector<8x128xf32>
    %c0_3 = arith.constant 0 : index
    %c0_4 = arith.constant 0 : index
    %3 = vector.load %arg3[%c0_3, %c0_4] : memref<1x128xf32, #tpu.memory_space<vmem>>, vector<1x128xf32>
    %4 = vector.broadcast %3 : vector<1x128xf32> to vector<8x128xf32>
    %5 = arith.addf %2, %4 : vector<8x128xf32>
    %c0_5 = arith.constant 0 : index
    %c0_6 = arith.constant 0 : index
    %6 = vector.load %arg4[%c0_5, %c0_6] : memref<8x128xf32, #tpu.memory_space<vmem>>, vector<8x128xf32>
    tpu.vector_store %arg4[%c0_5, %c0_6], %5 {strides = array<i32>} : memref<8x128xf32, #tpu.memory_space<vmem>>, vector<8x128xf32>,
    return
  }
  func.func @transform_0(%arg0: i32) -> (i32, i32) {
    %c0_i32 = arith.constant 0 : i32
    %c0_i32_0 = arith.constant 0 : i32
    return %arg0, %c0_i32 : i32, i32
  }
  func.func @transform_1(%arg0: i32) -> (i32, i32) {
    %c0_i32 = arith.constant 0 : i32
    %c0_i32_0 = arith.constant 0 : i32
    %c0_i32_1 = arith.constant 0 : i32
    return %c0_i32, %c0_i32_0 : i32, i32
  }
  func.func @transform_2(%arg0: i32) -> (i32, i32) {
    %c0_i32 = arith.constant 0 : i32
    %c0_i32_0 = arith.constant 0 : i32
    %c0_i32_1 = arith.constant 0 : i32
    return %c0_i32, %c0_i32_0 : i32, i32
  }
  func.func @transform_3(%arg0: i32) -> (i32, i32) {
    %c0_i32 = arith.constant 0 : i32
    %c0_i32_0 = arith.constant 0 : i32
    return %arg0, %c0_i32 : i32, i32
  }
}

</mosaic_0001>

<llo_original>
// kernel: albert_sop_head.1
$region0: #{albert_sop_head.1}
  #allocation0 [shape = 'u32[]', space=smem, size = 0x4, offset = 0x4, fixed_abs, tag = 'smem constant byte address 0x4 - core index']
  #allocation1 [shape = 'u32[144,128]{1,0:T(1,128)}', space=vmem, size = 0x12000, scoped, tag = 'internal scratch']
  %s0 = inlined_call_operand.vmem [shape: f32[8,32], index: 0, kind: input, shape index: {}]
  %s1 = inlined_call_operand.vmem [shape: f32[32,128], index: 1, kind: input, shape index: {}]
  %s2 = inlined_call_operand.vmem [shape: f32[1,128], index: 2, kind: input, shape index: {}]
  %s3 = inlined_call_operand.vmem [shape: f32[8,128], index: 3, kind: output, shape index: {}]
  %s4 = sld [smem:[#allocation0]]
  $region22: #{albert_sop_head.1} parent=0
    _
  %s6 = ssub.s32 1, %s4
  %s7 = scalar_select 0, %s6, %s4
  // Predicated region
  $region2: #{albert_sop_head.1} parent=0 // pred_check
    _
  $region3: #{albert_sop_head.1} parent=0 // pred_check_branch
    %9 = sbr.rel (0) target = $region5
  $region4: #{albert_sop_head.1} parent=0 // pred_region
    _
  $region5: #{albert_sop_head.1} parent=0 // pred_fallthru
    _
  // Predicated region
  $region6: #{albert_sop_head.1} parent=0 // pred_check
    _
  $region7: #{albert_sop_head.1} parent=0 // pred_check_branch
    %11 = sbr.rel (0) target = $region9
  $region8: #{albert_sop_head.1} parent=0 // pred_region
    _
  $region9: #{albert_sop_head.1} parent=0 // pred_fallthru
    _
  // Predicated region
  $region10: #{albert_sop_head.1} parent=0 // pred_check
    _
  $region11: #{albert_sop_head.1} parent=0 // pred_check_branch
    %13 = sbr.rel (0) target = $region13
  $region12: #{albert_sop_head.1} parent=0 // pred_region
    _
  $region13: #{albert_sop_head.1} parent=0 // pred_fallthru
    _
  %v14 = vld [vmem:[%s0] sm:$0xff]
  %v15 = vld [vmem:[%s1] sm:$0xff]
  %v16 = vld [vmem:[%s1 + $0x8] sm:$0xff]
  %v17 = vld [vmem:[%s1 + $0x10] sm:$0xff]
  %v18 = vld [vmem:[%s1 + $0x18] sm:$0xff]
  %v19 = vld [vmem:[%s2] sm:$0x1]
  %v21 = vlaneseq
  %v22 = vshrl.u32 %v21, 7
  %v23 = vsub.s32 0, %v22
  %v24 = vrot.slane %v19, %v23
  %vm26 = vcmask 261120
  %v28 = vsel %vm26, %v14, 0
  %30 = vmatprep.subr.mxu0 0.0
  %31 = vmatpush1.msra.mxu0 %v15
  %32 = vmatprep.subr.mxu0 0.0
  %33 = vmatpush1.msra.mxu0 %v16
  %34 = vmatprep.subr.mxu0 0.0
  %35 = vmatpush1.msra.mxu0 %v17
  %36 = vmatprep.subr.mxu0 0.0
  %37 = vmatpush1.msra.mxu0 %v18
  %38 = vmatprep.subr.mxu0 0.0
  %39 = vmatpush1.msra.mxu0 0.0
  %40 = vmatprep.subr.mxu0 0.0
  %41 = vmatpush1.msra.mxu0 0.0
  %42 = vmatprep.subr.mxu0 0.0
  %43 = vmatpush1.msra.mxu0 0.0
  %44 = vmatprep.subr.mxu0 0.0
  %45 = vmatpush1.msra.mxu0 0.0
  %46 = vmatprep.subr.mxu0 0.0
  %47 = vmatpush1.msra.mxu0 0.0
  %48 = vmatprep.subr.mxu0 0.0
  %49 = vmatpush1.msra.mxu0 0.0
  %50 = vmatprep.subr.mxu0 0.0
  %51 = vmatpush1.msra.mxu0 0.0
  %52 = vmatprep.subr.mxu0 0.0
  %53 = vmatpush1.msra.mxu0 0.0
  %54 = vmatprep.subr.mxu0 0.0
  %55 = vmatpush1.msra.mxu0 0.0
  %56 = vmatprep.subr.mxu0 0.0
  %57 = vmatpush1.msra.mxu0 0.0
  %58 = vmatprep.subr.mxu0 0.0
  %59 = vmatpush1.msra.mxu0 0.0
  %60 = vmatprep.subr.mxu0 0.0
  %61 = vmatpush1.msra.mxu0 0.0
  %62 = vmatprep.subr.mxu0 0.0
  %63 = vmatpush1.msra.mxu0 0.0
  %64 = vmatprep.subr.mxu0 0.0
  %65 = vmatpush1.msra.mxu0 0.0
  %66 = vmatprep.subr.mxu0 0.0
  %67 = vmatpush1.msra.mxu0 0.0
  %68 = vmatprep.subr.mxu0 0.0
  %69 = vmatpush1.msra.mxu0 0.0
  %70 = vmatprep.subr.mxu0 0.0
  %71 = vmatpush1.msra.mxu0 0.0
  %72 = vmatprep.subr.mxu0 0.0
  %73 = vmatpush1.msra.mxu0 0.0
  %74 = vmatprep.subr.mxu0 0.0
  %75 = vmatpush1.msra.mxu0 0.0
  %76 = vmatprep.subr.mxu0 0.0
  %77 = vmatpush1.msra.mxu0 0.0
  %78 = vmatprep.subr.mxu0 0.0
  %79 = vmatpush1.msra.mxu0 0.0
  %80 = vmatprep.subr.mxu0 0.0
  %81 = vmatpush1.msra.mxu0 0.0
  %82 = vmatprep.subr.mxu0 0.0
  %83 = vmatpush1.msra.mxu0 0.0
  %84 = vmatprep.subr.mxu0 0.0
  %85 = vmatpush1.msra.mxu0 0.0
  %86 = vmatprep.subr.mxu0 0.0
  %87 = vmatpush1.msra.mxu0 0.0
  %88 = vmatprep.subr.mxu0 0.0
  %89 = vmatpush1.msra.mxu0 0.0
  %90 = vmatprep.subr.mxu0 0.0
  %91 = vmatpush1.msra.mxu0 0.0
  %92 = vmatprep.subr.mxu0 0.0
  %93 = vmatpush1.msra.mxu0 0.0
  %94 = vmatprep.mubr.f32.mxu0 0.0
  %95 = vmatmul.mubr.f32.gmra.mrb[0].mxu0 %v28
  %v96 = vpop.f32.mrb[0].mxu0
  %v97 = vadd.f32 %v24, %v96
  %v98 = vpop.f32.mrb[0].mxu0
  %99 = vdwg.mxu0
  %100 = vst [vmem:[%s3] sm:$0xff] %v97
  // Predicated region
  $region14: #{albert_sop_head.1} parent=0 // pred_check
    _
  $region15: #{albert_sop_head.1} parent=0 // pred_check_branch
    %102 = sbr.rel (0) target = $region17
  $region16: #{albert_sop_head.1} parent=0 // pred_region
    _
  $region17: #{albert_sop_head.1} parent=0 // pred_fallthru
    _
  // Predicated region
  $region18: #{albert_sop_head.1} parent=0 // pred_check
    _
  $region19: #{albert_sop_head.1} parent=0 // pred_check_branch
    %104 = sbr.rel (0) target = $region21
  $region20: #{albert_sop_head.1} parent=0 // pred_region
    _
  $region21: #{albert_sop_head.1} parent=0 // pred_fallthru
    _

</llo_original>
